<compile_context>
chip_gen: v6e
topology: v6e:2x2x1
jax: 0.10.0
libtpu: 0.0.40
codegen_flags: <defaults>
</compile_context>

<pallas_src>
from collections import namedtuple

import jax
import jax.numpy as jnp
from jax.experimental import pallas as pl
from jax.experimental.pallas import tpu as pltpu


# --------------------------------------------------------------------------------------
# Host-side (static) planning helpers.
# --------------------------------------------------------------------------------------
def _round_up(x, m):
    return ((x + m - 1) // m) * m


def _tile_and_pad(dim, desired):
    """Largest lane-aligned tile (multiple of 128, <= desired) keeping the padding of
    `dim` within ~6%; returns (tile, padded_dim) with tile dividing padded_dim."""
    desired = max(128, (desired // 128) * 128)      # round the tile request itself
    d128 = _round_up(dim, 128)
    if desired >= d128:
        return d128, d128
    limit = max(int(d128 * 1.06), d128 + 128)
    best_t, best_p = 128, d128
    for t in range(128, desired + 1, 128):
        p = _round_up(dim, t)
        if p <= limit and t >= best_t:
            best_t, best_p = t, p
    return best_t, best_p


def _largest_div_tile(padded, desired):
    """Largest multiple-of-128 divisor of `padded` that is <= desired."""
    desired = max(128, (desired // 128) * 128)
    best = 128
    for t in range(128, min(desired, padded) + 1, 128):
        if padded % t == 0:
            best = t
    return best


def _vmem_limit_bytes():
    """Per-generation scoped-VMEM limit: ~48 MiB on v7x (64 MiB physical per TC),
    up to 96 MiB on v5e/v6e (128 MiB physical)."""
    try:
        cap = pltpu.get_tpu_info().vmem_capacity_bytes
    except Exception:
        cap = 64 * 1024 * 1024          # conservative (v7x-sized) fallback
    return int(min(cap * 3 // 4, 96 * 1024 * 1024))


Plan = namedtuple(
    "Plan",
    ["bc", "bp", "img_dim", "sino_dim",
     "tk1", "img_k_pad", "tn1", "tk2", "sino_pad", "tn2", "img_n_pad", "vmem_limit"],
)


def plan_tiles(bc, img_dim, sino_dim, *,
               k1_tile=4096, n1_tile=1280, k2_tile=2560, n2_tile=2048):
    """Static tiling plan.  Defaults target the module scale (img 65536, sino 12480):
    call 1 grid (10, 16), call 2 grid (32, 5); 10-21 MiB double-buffered operator blocks
    (fits v7x's 64 MiB VMEM with margin, trivially fits v5e/v6e's 128 MiB)."""
    bp = max(_round_up(bc, 8), 8)                      # sublane-pad the tiny batch
    tk1, img_k_pad = _tile_and_pad(img_dim, k1_tile)   # K of matmul 1
    tn2, img_n_pad = _tile_and_pad(img_dim, n2_tile)   # out-N of matmul 2
    # The sinogram dim is shared (out-N of call 1 / K of call 2): fix its padding once,
    # then pick each call's tile independently as the largest lane-multiple divisor.
    _, sino_pad = _tile_and_pad(sino_dim, max(n1_tile, k2_tile))
    tn1 = _largest_div_tile(sino_pad, n1_tile)
    tk2 = _largest_div_tile(sino_pad, k2_tile)
    return Plan(bc, bp, img_dim, sino_dim, tk1, img_k_pad, tn1, tk2, sino_pad,
                tn2, img_n_pad, _vmem_limit_bytes())


def prepare_operators(proj_mat, fbp_mat, plan):
    """One-time (amortized) operator prep: bf16 cast + zero-pad to the planned shapes."""
    img_dim, sino_dim = proj_mat.shape
    assert (img_dim, sino_dim) == (plan.img_dim, plan.sino_dim)
    assert fbp_mat.shape == (sino_dim, img_dim)
    a = jnp.pad(proj_mat.astype(jnp.bfloat16),
                ((0, plan.img_k_pad - img_dim), (0, plan.sino_pad - sino_dim)))
    b = jnp.pad(fbp_mat.astype(jnp.bfloat16),
                ((0, plan.sino_pad - sino_dim), (0, plan.img_n_pad - img_dim)))
    return a, b


# --------------------------------------------------------------------------------------
# Kernels.
# --------------------------------------------------------------------------------------
# Kernel 1: y_err = proj - x @ proj_mat.  The residual is fused by initialising the
# k-resident output block with the measured sinogram and subtracting partial matmuls.
def _proj_residual_kernel(x_ref, a_ref, proj_ref, yerr_ref):
    k = pl.program_id(1)

    @pl.when(k == 0)
    def _():
        yerr_ref[...] = proj_ref[...]

    # x is fully VMEM-resident; pull the k-th (bp, tk1) slab with a dynamic leading index.
    yerr_ref[...] -= jnp.dot(x_ref[k], a_ref[...],
                             preferred_element_type=jnp.float32)


# Kernel 2: out = y_err @ fbp_mat, accumulating straight into the resident output block.
def _fbp_kernel(y_ref, b_ref, out_ref):
    k = pl.program_id(1)

    @pl.when(k == 0)
    def _():
        out_ref[...] = jnp.zeros_like(out_ref)

    out_ref[...] += jnp.dot(y_ref[k].astype(jnp.bfloat16), b_ref[...],
                            preferred_element_type=jnp.float32)


# --------------------------------------------------------------------------------------
# Forward pass.
# --------------------------------------------------------------------------------------
def fidelity_forward(input_data, proj, proj_mat_pad, fbp_mat_pad, *, plan):
    """input_data: (B, C, N, M) f32, proj: (B, C, angles, det) f32.
    proj_mat_pad / fbp_mat_pad: bf16 operators pre-padded by `prepare_operators`."""
    B, C, N, M = input_data.shape
    _, _, A, D = proj.shape
    p = plan
    assert B * C == p.bc and N * M == p.img_dim and A * D == p.sino_dim
    assert proj_mat_pad.shape == (p.img_k_pad, p.sino_pad)
    assert fbp_mat_pad.shape == (p.sino_pad, p.img_n_pad)

    f32, bf16 = jnp.float32, jnp.bfloat16
    n_k1 = p.img_k_pad // p.tk1
    n_k2 = p.sino_pad // p.tk2

    # Small per-call tensors: pad, and lay the skinny LHS out as (K_blocks, bp, tk) so
    # the whole thing sits in VMEM (constant index_map) and is sliced per k-step.
    x = input_data.reshape(p.bc, p.img_dim).astype(bf16)
    x = jnp.pad(x, ((0, p.bp - p.bc), (0, p.img_k_pad - p.img_dim)))
    x3 = x.reshape(p.bp, n_k1, p.tk1).transpose(1, 0, 2)

    pr = proj.reshape(p.bc, p.sino_dim).astype(f32)
    pr = jnp.pad(pr, ((0, p.bp - p.bc), (0, p.sino_pad - p.sino_dim)))

    cparams = pltpu.CompilerParams(
        dimension_semantics=("parallel", "arbitrary"),
        vmem_limit_bytes=p.vmem_limit,
    )

    # ---- call 1: projection + fused residual ----
    grid1 = (p.sino_pad // p.tn1, n_k1)
    yerr = pl.pallas_call(
        _proj_residual_kernel,
        out_shape=jax.ShapeDtypeStruct((p.bp, p.sino_pad), f32),
        grid_spec=pltpu.PrefetchScalarGridSpec(
            num_scalar_prefetch=0,
            grid=grid1,
            in_specs=[
                pl.BlockSpec((n_k1, p.bp, p.tk1), lambda j, k: (0, 0, 0)),  # x, resident
                pl.BlockSpec((p.tk1, p.tn1), lambda j, k: (k, j)),          # projector op
                pl.BlockSpec((p.bp, p.tn1), lambda j, k: (0, j)),           # measured sino
            ],
            out_specs=pl.BlockSpec((p.bp, p.tn1), lambda j, k: (0, j)),
        ),
        compiler_params=cparams,
        cost_estimate=pl.CostEstimate(
            flops=2 * p.bp * p.img_k_pad * p.sino_pad,
            transcendentals=0,
            bytes_accessed=(proj_mat_pad.size * 2 + x3.size * 2
                            + pr.size * 4 + p.bp * p.sino_pad * 4),
        ),
    )(x3, proj_mat_pad, pr)

    # ---- call 2: FBP of the residual ----
    y3 = yerr.reshape(p.bp, n_k2, p.tk2).transpose(1, 0, 2)   # tiny (bp x sino_pad) f32

    grid2 = (p.img_n_pad // p.tn2, n_k2)
    out_pad = pl.pallas_call(
        _fbp_kernel,
        out_shape=jax.ShapeDtypeStruct((p.bp, p.img_n_pad), f32),
        grid_spec=pltpu.PrefetchScalarGridSpec(
            num_scalar_prefetch=0,
            grid=grid2,
            in_specs=[
                pl.BlockSpec((n_k2, p.bp, p.tk2), lambda j, k: (0, 0, 0)),  # y_err, resident
                pl.BlockSpec((p.tk2, p.tn2), lambda j, k: (k, j)),          # FBP operator
            ],
            out_specs=pl.BlockSpec((p.bp, p.tn2), lambda j, k: (0, j)),
        ),
        compiler_params=cparams,
        cost_estimate=pl.CostEstimate(
            flops=2 * p.bp * p.sino_pad * p.img_n_pad,
            transcendentals=0,
            bytes_accessed=(fbp_mat_pad.size * 2 + yerr.size * 4
                            + p.bp * p.img_n_pad * 4),
        ),
    )(y3, fbp_mat_pad)

    return out_pad[:p.bc, :p.img_dim].reshape(B, C, N, M)


if __name__ == "__main__":
    key = jax.random.PRNGKey(0)
    k1, k2, k3, k4, k5 = jax.random.split(key, 5)

    # Small shapes consistent with the module's axis conventions
    # (module uses N=M=256, angles=20, det_pixels=624; scaled down here).
    B, C, N, M = 2, 1, 16, 16
    ANGLES, DET = 20, 24
    IMG, SINO = N * M, ANGLES * DET          # 256, 480 (exercises padding to 512)

    input_data = jax.random.normal(k1, (B, C, N, M), dtype=jnp.float32)
    proj = jax.random.normal(k2, (B, C, ANGLES, DET), dtype=jnp.float32)

    # Deterministic synthetic linear operators standing in for ODL's
    # RayTransform (image -> sinogram) and FBP (sinogram -> image).
    proj_mat = jax.random.normal(k3, (IMG, SINO), dtype=jnp.float32) / jnp.sqrt(IMG * 1.0)
    fbp_mat = jax.random.normal(k4, (SINO, IMG), dtype=jnp.float32) / jnp.sqrt(SINO * 1.0)

    # nn.Parameter(torch.Tensor(1).squeeze()) — scalar weight, defined in __init__
    # but unused in forward(); kept for shape parity.
    weight = jax.random.normal(k5, (), dtype=jnp.float32)

    # Small tiles at test size so the multi-step K / multi-tile N paths are exercised.
    plan = plan_tiles(B * C, IMG, SINO,
                      k1_tile=128, n1_tile=128, k2_tile=128, n2_tile=128)
    # Operator prep (bf16 cast + pad) done ONCE — amortized across forward passes.
    a_pad, b_pad = prepare_operators(proj_mat, fbp_mat, plan)

    fwd = jax.jit(fidelity_forward, static_argnames=("plan",))
    out = fwd(input_data, proj, a_pad, b_pad, plan=plan)
    out = jax.block_until_ready(out)
    assert out.shape == (B, C, N, M)

    # Pure-JAX reference of the same linearized forward pass at matching (bf16-weight,
    # f32-accumulate) precision.
    x_flat = input_data.reshape(B * C, IMG)
    p_flat = proj.reshape(B * C, SINO)
    x_bf = x_flat.astype(jnp.bfloat16).astype(jnp.float32)
    a_bf = proj_mat.astype(jnp.bfloat16).astype(jnp.float32)
    b_bf = fbp_mat.astype(jnp.bfloat16).astype(jnp.float32)
    hi = jax.lax.Precision.HIGHEST
    yerr_ref = p_flat - jnp.dot(x_bf, a_bf, precision=hi)
    ref = jnp.dot(yerr_ref.astype(jnp.bfloat16).astype(jnp.float32), b_bf,
                  precision=hi).reshape(B, C, N, M)
    assert jnp.allclose(out, ref, atol=1e-2, rtol=1e-2)

    print("KERNEL_OK")
</pallas_src>

<mosaic_0001>
module attributes {stable_mosaic.version = 11 : i64} {
  func.func @_proj_residual_kernel(%arg0: i32, %arg1: i32, %arg2: memref<2x8x128xbf16, #tpu.memory_space<vmem>>, %arg3: memref<128x128xbf16, #tpu.memory_space<vmem>>, %arg4: memref<8x128xf32, #tpu.memory_space<vmem>>, %arg5: memref<8x128xf32, #tpu.memory_space<vmem>>) attributes {dimension_semantics = [#tpu.dimension_semantics<parallel>, #tpu.dimension_semantics<arbitrary>], iteration_bounds = array<i64: 4, 2>, scalar_prefetch = 0 : i64, scratch_operands = 0 : i64, tpu.core_type = #tpu.core_type<tc>, window_params = [{pipeline_mode = #tpu.pipeline_mode<synchronous>, transform_indices = @transform_0, window_bounds = array<i64: 2, 8, 128>}, {transform_indices = @transform_1, window_bounds = array<i64: 128, 128>}, {transform_indices = @transform_2, window_bounds = array<i64: 8, 128>}, {transform_indices = @transform_3, window_bounds = array<i64: 8, 128>}]} {
    %c0_i32 = arith.constant 0 : i32
    %0 = arith.cmpi eq, %arg1, %c0_i32 : i32
    %1 = arith.extui %0 : i1 to i32
    %c0_i32_0 = arith.constant 0 : i32
    %2 = arith.cmpi ne, %1, %c0_i32_0 : i32
    scf.if %2 {
      %c0_8 = arith.constant 0 : index
      %c0_9 = arith.constant 0 : index
      %11 = vector.load %arg4[%c0_8, %c0_9] : memref<8x128xf32, #tpu.memory_space<vmem>>, vector<8x128xf32>
      %c0_10 = arith.constant 0 : index
      %c0_11 = arith.constant 0 : index
      %12 = vector.load %arg5[%c0_10, %c0_11] : memref<8x128xf32, #tpu.memory_space<vmem>>, vector<8x128xf32>
      tpu.vector_store %arg5[%c0_10, %c0_11], %11 {strides = array<i32>} : memref<8x128xf32, #tpu.memory_space<vmem>>, vector<8x128xf32>,
    } else {
    }
    %c0 = arith.constant 0 : index
    %c0_1 = arith.constant 0 : index
    %3 = vector.load %arg5[%c0, %c0_1] : memref<8x128xf32, #tpu.memory_space<vmem>>, vector<8x128xf32>
    %4 = arith.index_cast %arg1 : i32 to index
    %c0_2 = arith.constant 0 : index
    %c0_3 = arith.constant 0 : index
    %5 = vector.load %arg2[%4, %c0_2, %c0_3] : memref<2x8x128xbf16, #tpu.memory_space<vmem>>, vector<1x8x128xbf16>
    %6 = vector.shape_cast %5 : vector<1x8x128xbf16> to vector<8x128xbf16>
    %c0_4 = arith.constant 0 : index
    %c0_5 = arith.constant 0 : index
    %7 = vector.load %arg3[%c0_4, %c0_5] : memref<128x128xbf16, #tpu.memory_space<vmem>>, vector<128x128xbf16>
    %cst = arith.constant dense<0.000000e+00> : vector<8x128xf32>
    %8 = tpu.matmul %6, %7, %cst {dimension_numbers = #tpu.dot_dimension_numbers<[1], [0], [0], [1], [0, 0, 1, 1], [], []>} : vector<8x128xbf16>, vector<128x128xbf16>, vector<8x128xf32> -> vector<8x128xf32>
    %9 = arith.subf %3, %8 : vector<8x128xf32>
    %c0_6 = arith.constant 0 : index
    %c0_7 = arith.constant 0 : index
    %10 = vector.load %arg5[%c0_6, %c0_7] : memref<8x128xf32, #tpu.memory_space<vmem>>, vector<8x128xf32>
    tpu.vector_store %arg5[%c0_6, %c0_7], %9 {strides = array<i32>} : memref<8x128xf32, #tpu.memory_space<vmem>>, vector<8x128xf32>,
    return
  }
  func.func @transform_0(%arg0: i32, %arg1: i32) -> (i32, i32, i32) {
    %c0_i32 = arith.constant 0 : i32
    %c0_i32_0 = arith.constant 0 : i32
    %c0_i32_1 = arith.constant 0 : i32
    %c0_i32_2 = arith.constant 0 : i32
    return %c0_i32, %c0_i32_0, %c0_i32_1 : i32, i32, i32
  }
  func.func @transform_1(%arg0: i32, %arg1: i32) -> (i32, i32) {
    %c0_i32 = arith.constant 0 : i32
    return %arg1, %arg0 : i32, i32
  }
  func.func @transform_2(%arg0: i32, %arg1: i32) -> (i32, i32) {
    %c0_i32 = arith.constant 0 : i32
    %c0_i32_0 = arith.constant 0 : i32
    return %c0_i32, %arg0 : i32, i32
  }
  func.func @transform_3(%arg0: i32, %arg1: i32) -> (i32, i32) {
    %c0_i32 = arith.constant 0 : i32
    %c0_i32_0 = arith.constant 0 : i32
    return %c0_i32, %arg0 : i32, i32
  }
}

module attributes {stable_mosaic.version = 11 : i64} {
  func.func @_fbp_kernel(%arg0: i32, %arg1: i32, %arg2: memref<4x8x128xf32, #tpu.memory_space<vmem>>, %arg3: memref<128x128xbf16, #tpu.memory_space<vmem>>, %arg4: memref<8x128xf32, #tpu.memory_space<vmem>>) attributes {dimension_semantics = [#tpu.dimension_semantics<parallel>, #tpu.dimension_semantics<arbitrary>], iteration_bounds = array<i64: 2, 4>, scalar_prefetch = 0 : i64, scratch_operands = 0 : i64, tpu.core_type = #tpu.core_type<tc>, window_params = [{pipeline_mode = #tpu.pipeline_mode<synchronous>, transform_indices = @transform_0, window_bounds = array<i64: 4, 8, 128>}, {transform_indices = @transform_1, window_bounds = array<i64: 128, 128>}, {transform_indices = @transform_2, window_bounds = array<i64: 8, 128>}]} {
    %c0_i32 = arith.constant 0 : i32
    %0 = arith.cmpi eq, %arg1, %c0_i32 : i32
    %1 = arith.extui %0 : i1 to i32
    %c0_i32_0 = arith.constant 0 : i32
    %2 = arith.cmpi ne, %1, %c0_i32_0 : i32
    scf.if %2 {
      %cst_8 = arith.constant 0.000000e+00 : f32
      %12 = vector.broadcast %cst_8 : f32 to vector<8x128xf32>
      %c0_9 = arith.constant 0 : index
      %c0_10 = arith.constant 0 : index
      %13 = vector.load %arg4[%c0_9, %c0_10] : memref<8x128xf32, #tpu.memory_space<vmem>>, vector<8x128xf32>
      tpu.vector_store %arg4[%c0_9, %c0_10], %12 {strides = array<i32>} : memref<8x128xf32, #tpu.memory_space<vmem>>, vector<8x128xf32>,
    } else {
    }
    %c0 = arith.constant 0 : index
    %c0_1 = arith.constant 0 : index
    %3 = vector.load %arg4[%c0, %c0_1] : memref<8x128xf32, #tpu.memory_space<vmem>>, vector<8x128xf32>
    %4 = arith.index_cast %arg1 : i32 to index
    %c0_2 = arith.constant 0 : index
    %c0_3 = arith.constant 0 : index
    %5 = vector.load %arg2[%4, %c0_2, %c0_3] : memref<4x8x128xf32, #tpu.memory_space<vmem>>, vector<1x8x128xf32>
    %6 = vector.shape_cast %5 : vector<1x8x128xf32> to vector<8x128xf32>
    %7 = arith.truncf %6 : vector<8x128xf32> to vector<8x128xbf16>
    %c0_4 = arith.constant 0 : index
    %c0_5 = arith.constant 0 : index
    %8 = vector.load %arg3[%c0_4, %c0_5] : memref<128x128xbf16, #tpu.memory_space<vmem>>, vector<128x128xbf16>
    %cst = arith.constant dense<0.000000e+00> : vector<8x128xf32>
    %9 = tpu.matmul %7, %8, %cst {dimension_numbers = #tpu.dot_dimension_numbers<[1], [0], [0], [1], [0, 0, 1, 1], [], []>} : vector<8x128xbf16>, vector<128x128xbf16>, vector<8x128xf32> -> vector<8x128xf32>
    %10 = arith.addf %3, %9 : vector<8x128xf32>
    %c0_6 = arith.constant 0 : index
    %c0_7 = arith.constant 0 : index
    %11 = vector.load %arg4[%c0_6, %c0_7] : memref<8x128xf32, #tpu.memory_space<vmem>>, vector<8x128xf32>
    tpu.vector_store %arg4[%c0_6, %c0_7], %10 {strides = array<i32>} : memref<8x128xf32, #tpu.memory_space<vmem>>, vector<8x128xf32>,
    return
  }
  func.func @transform_0(%arg0: i32, %arg1: i32) -> (i32, i32, i32) {
    %c0_i32 = arith.constant 0 : i32
    %c0_i32_0 = arith.constant 0 : i32
    %c0_i32_1 = arith.constant 0 : i32
    %c0_i32_2 = arith.constant 0 : i32
    return %c0_i32, %c0_i32_0, %c0_i32_1 : i32, i32, i32
  }
  func.func @transform_1(%arg0: i32, %arg1: i32) -> (i32, i32) {
    %c0_i32 = arith.constant 0 : i32
    return %arg1, %arg0 : i32, i32
  }
  func.func @transform_2(%arg0: i32, %arg1: i32) -> (i32, i32) {
    %c0_i32 = arith.constant 0 : i32
    %c0_i32_0 = arith.constant 0 : i32
    return %c0_i32, %arg0 : i32, i32
  }
}

</mosaic_0001>

<llo_original>
// kernel: fidelity_forward.2
$region0: #{fidelity_forward.2}
  #allocation0 [shape = 'u32[]', space=smem, size = 0x4, offset = 0x4, fixed_abs, tag = 'smem constant byte address 0x4 - core index']
  #allocation1 [shape = 'u32[144,128]{1,0:T(1,128)}', space=vmem, size = 0x12000, scoped, tag = 'internal scratch']
  %s0 = inlined_call_operand.vmem [shape: bf16[2,8,128], index: 0, kind: input, shape index: {}]
  %s1 = inlined_call_operand.hbm [shape: bf16[256,512], index: 1, kind: input, shape index: {}]
  %s2 = inlined_call_operand.vmem [shape: f32[8,512], index: 2, kind: input, shape index: {}]
  %s3 = inlined_call_operand.vmem [shape: f32[8,512], index: 3, kind: output, shape index: {}]
  %s4 = sld [smem:[#allocation0]]
  $region53: #{fidelity_forward.2} parent=0
    _
  %s6 = ssub.s32 1, %s4
  %s7 = scalar_select 0, %s6, %s4
  $region1: #{fidelity_forward.2} parent=0
    #allocation2 [shape = 'u8[65536]{0}', space=vmem, size = 0x10000, scoped, tag = 'input window, operand 1']
    #allocation3 [shape = 's32[2]{0}', space=sflag, size = 0x8, scoped, tag = 'scoped memory for fidelity_forward.2']
    %8 = vsyncpa [#allocation3], 0
    %s9 = scalar_lea.sflag [#allocation3], 1
    %10 = vsyncpa %s9, 0
    loop: start=0, step=1, limit=10
    $region2: #{fidelity_forward.2} parent=1 // loop_pre_header
      _
    $region3: #{fidelity_forward.2} parent=1 // loop_header
      %s12 = sphi 0, %s16
      %p13 = scmp.ge.s32.totalorder %s12, 10
      %s19 = sphi 0, %s31
      %s20 = sphi 0, %s27
      %s21 = sphi 0, %s19
      %s22 = sphi 0, %s20
      %s23 = sphi 0, %s21
      %s24 = sphi 0, %s22
      %s32 = sphi 0, %s32
      %s34 = sphi 0, %s32
      %s35 = sphi 0, %s34
      %s49 = sphi 0, %s35
      %s57 = sphi 0, %s59
      %s60 = sphi 0, %s57
      %s61 = sphi 0, %s60
      %s77 = sphi 0, %s61
      %s83 = sphi 0, %s85
      %s86 = sphi 0, %s83
      %s87 = sphi 0, %s86
      %s103 = sphi 0, %s87
      %s109 = sphi 0, %s111
      %s112 = sphi 0, %s109
      %s113 = sphi 0, %s112
      %s129 = sphi 0, %s113
    $region4: #{fidelity_forward.2} parent=1 // loop_header_branch
      %15 = sbr.rel (%p13) target = $region8
    $region5: #{fidelity_forward.2} parent=1 // loop_body
      %s17 = ssub.s32 %s12, 1
      %s18 = ssub.s32 %s12, 2
      %s25 = sadd.s32 1, %s20
      %p26 = scmp.ge.s32.totalorder %s25, 2
      %s27 = scalar_select %p26, 0, %s25
      %s28 = sadd.s32 1, %s19
      %s29 = scalar_select %p26, %s28, %s19
      %p30 = scmp.ge.s32.totalorder %s29, 4
      %s31 = scalar_select %p30, 0, %s29
      %s33 = sadd.s32 %s32, 1
      %p36 = scmp.eq.s32.totalorder %s12, 7
      %p37 = scmp.ne.s32.totalorder %s32, %s34
      %p38 = scmp.eq.s32.totalorder %s12, 0
      %p39 = por %p37, %p38
      %p40 = scmp.ne.s32.totalorder %s32, %s34
      %p41 = scmp.eq.s32.totalorder %s17, 7
      %p42 = por %p40, %p41
      %p43 = scmp.ne.s32.totalorder %s34, %s35
      %p44 = scmp.eq.s32.totalorder %s17, 0
      %p45 = por %p43, %p44
      %p46 = scmp.ne.s32.totalorder %s34, %s35
      %p47 = scmp.eq.s32.totalorder %s18, 7
      %p48 = por %p46, %p47
      %p50 = scmp.ne.s32.totalorder %s35, %s49
      %p51 = scmp.eq.s32.totalorder %s18, 0
      %p52 = por %p50, %p51
      %s53 = ssub.s32 %s20, %s27
      %s54 = ssub.s32 %s19, %s31
      %s55 = sor.u32 %s53, %s54
      %p56 = scmp.eq.s32.totalorder %s55, 0
      %s58 = sadd.s32 %s57, 1
      %s59 = scalar_select %p56, %s57, %s58
      %p62 = pneg %p56
      %p63 = scmp.eq.s32.totalorder %s12, 7
      %p64 = por %p62, %p63
      %p65 = scmp.ne.s32.totalorder %s57, %s60
      %p66 = scmp.eq.s32.totalorder %s12, 0
      %p67 = por %p65, %p66
      %p68 = scmp.ne.s32.totalorder %s57, %s60
      %p69 = scmp.eq.s32.totalorder %s17, 7
      %p70 = por %p68, %p69
      %p71 = scmp.ne.s32.totalorder %s60, %s61
      %p72 = scmp.eq.s32.totalorder %s17, 0
      %p73 = por %p71, %p72
      %p74 = scmp.ne.s32.totalorder %s60, %s61
      %p75 = scmp.eq.s32.totalorder %s18, 7
      %p76 = por %p74, %p75
      %p78 = scmp.ne.s32.totalorder %s61, %s77
      %p79 = scmp.eq.s32.totalorder %s18, 0
      %p80 = por %p78, %p79
      %s81 = ssub.s32 %s19, %s31
      %p82 = scmp.eq.s32.totalorder %s81, 0
      %s84 = sadd.s32 %s83, 1
      %s85 = scalar_select %p82, %s83, %s84
      %p88 = pneg %p82
      %p89 = scmp.eq.s32.totalorder %s12, 7
      %p90 = por %p88, %p89
      %p91 = scmp.ne.s32.totalorder %s83, %s86
      %p92 = scmp.eq.s32.totalorder %s12, 0
      %p93 = por %p91, %p92
      %p94 = scmp.ne.s32.totalorder %s83, %s86
      %p95 = scmp.eq.s32.totalorder %s17, 7
      %p96 = por %p94, %p95
      %p97 = scmp.ne.s32.totalorder %s86, %s87
      %p98 = scmp.eq.s32.totalorder %s17, 0
      %p99 = por %p97, %p98
      %p100 = scmp.ne.s32.totalorder %s86, %s87
      %p101 = scmp.eq.s32.totalorder %s18, 7
      %p102 = por %p100, %p101
      %p104 = scmp.ne.s32.totalorder %s87, %s103
      %p105 = scmp.eq.s32.totalorder %s18, 0
      %p106 = por %p104, %p105
      %s107 = ssub.s32 %s19, %s31
      %p108 = scmp.eq.s32.totalorder %s107, 0
      %s110 = sadd.s32 %s109, 1
      %s111 = scalar_select %p108, %s109, %s110
      %p114 = pneg %p108
      %p115 = scmp.eq.s32.totalorder %s12, 7
      %p116 = por %p114, %p115
      %p117 = scmp.ne.s32.totalorder %s109, %s112
      %p118 = scmp.eq.s32.totalorder %s12, 0
      %p119 = por %p117, %p118
      %p120 = scmp.ne.s32.totalorder %s109, %s112
      %p121 = scmp.eq.s32.totalorder %s17, 7
      %p122 = por %p120, %p121
      %p123 = scmp.ne.s32.totalorder %s112, %s113
      %p124 = scmp.eq.s32.totalorder %s17, 0
      %p125 = por %p123, %p124
      %p126 = scmp.ne.s32.totalorder %s112, %s113
      %p127 = scmp.eq.s32.totalorder %s18, 7
      %p128 = por %p126, %p127
      %p130 = scmp.ne.s32.totalorder %s113, %s129
      %p131 = scmp.eq.s32.totalorder %s18, 0
      %p132 = por %p130, %p131
      %p133 = scmp.le.s32.totalorder 1, %s12
      %p134 = scmp.lt.s32.totalorder %s12, 9
      %p135 = pnand %p133, %p134
      %p136 = pneg %p135
      // Predicated region
      $region9: #{fidelity_forward.2} parent=5 // pred_check
        _
      $region10: #{fidelity_forward.2} parent=5 // pred_check_branch
        %138 = sbr.rel (%p135) target = $region12
      $region11: #{fidelity_forward.2} parent=5 // pred_region
        %s139 = ssub.s32 %s12, 1
        // Predicated region
        $region13: #{fidelity_forward.2} parent=11 // pred_check
          %p140 = pneg %p45
        $region14: #{fidelity_forward.2} parent=11 // pred_check_branch
          %142 = sbr.rel (%p140) target = $region16
        $region15: #{fidelity_forward.2} parent=11 // pred_region
          _
        $region16: #{fidelity_forward.2} parent=11 // pred_fallthru
          _
      $region12: #{fidelity_forward.2} parent=5 // pred_fallthru
        _
      %p143 = scmp.lt.s32.totalorder %s12, 8
      // Predicated region
      $region17: #{fidelity_forward.2} parent=5 // pred_check
        %p144 = pneg %p143
      $region18: #{fidelity_forward.2} parent=5 // pred_check_branch
        %146 = sbr.rel (%p144) target = $region20
      $region19: #{fidelity_forward.2} parent=5 // pred_region
        // Predicated region
        $region21: #{fidelity_forward.2} parent=19 // pred_check
          %p147 = pneg %p67
        $region22: #{fidelity_forward.2} parent=19 // pred_check_branch
          %149 = sbr.rel (%p147) target = $region24
        $region23: #{fidelity_forward.2} parent=19 // pred_region
          %s150 = sand.u32 %s57, 1
          %s151 = scalar_lea.sflag [#allocation3], %s150
          %s152 = sand.u32 %s57, 1
          %s153 = smul.addr %s152, 64
          %s154 = scalar_lea.vmem [#allocation2], %s153
          %s155 = smul.u32 16, %s20
          %s157 = ssub.s32 1024, 1024
          %158 = vsyncadd %s151, %s157
          %s159 = smul.addr %s155, 4
          %s160 = sadd.s32 %s19, %s159
          %s161 = smul.addr %s160, 64
          %s162 = scalar_lea.hbm %s1, %s161
          %s163 = sshll.u32 %s154, 4
          %s164 = int_to_ptr.vmem [resolvable:$true] %s163
          %169 = dma.hbm_to_vmem [thread:$0]  %s162, 1024, %s164, %s151, 256, 64, 4
        $region24: #{fidelity_forward.2} parent=19 // pred_fallthru
          _
        // Predicated region
        $region25: #{fidelity_forward.2} parent=19 // pred_check
          %p170 = pneg %p93
        $region26: #{fidelity_forward.2} parent=19 // pred_check_branch
          %172 = sbr.rel (%p170) target = $region28
        $region27: #{fidelity_forward.2} parent=19 // pred_region
          %p173 = scmp.lt.s32.totalorder %s19, 3
          %s174 = scalar_select %p173, %s19, 3
          %s175 = smul.addr %s174, 8
          %s176 = scalar_lea.vmem %s2, %s175
        $region28: #{fidelity_forward.2} parent=19 // pred_fallthru
          _
      $region20: #{fidelity_forward.2} parent=5 // pred_fallthru
        _
      %p177 = scmp.le.s32.totalorder 1, %s12
      %p178 = scmp.lt.s32.totalorder %s12, 9
      %p179 = pnand %p177, %p178
      %p180 = pneg %p179
      // Predicated region
      $region29: #{fidelity_forward.2} parent=5 // pred_check
        _
      $region30: #{fidelity_forward.2} parent=5 // pred_check_branch
        %182 = sbr.rel (%p179) target = $region32
      $region31: #{fidelity_forward.2} parent=5 // pred_region
        %s183 = ssub.s32 %s12, 1
        %s184 = sand.u32 %s60, 1
        %s185 = scalar_lea.sflag [#allocation3], %s184
        %s186 = sand.u32 %s60, 1
        %s187 = smul.addr %s186, 64
        %s188 = scalar_lea.vmem [#allocation2], %s187
        // Predicated region
        $region33: #{fidelity_forward.2} parent=31 // pred_check
          %p189 = pneg %p73
        $region34: #{fidelity_forward.2} parent=31 // pred_check_branch
          %191 = sbr.rel (%p189) target = $region36
        $region35: #{fidelity_forward.2} parent=31 // pred_region
          %192 = dma.done %s185, 1024
        $region36: #{fidelity_forward.2} parent=31 // pred_fallthru
          _
        %p193 = pneg %p45
        %p194 = pneg %p42
        %s195 = sand.u32 %s60, 1
        %s196 = scalar_lea.sflag [#allocation3], %s195
        %s197 = sand.u32 %s60, 1
        %s198 = smul.addr %s197, 64
        %s199 = scalar_lea.vmem [#allocation2], %s198
        %p200 = pneg %p73
        %p201 = pneg %p70
        %p202 = scmp.lt.s32.totalorder %s21, 3
        %s203 = scalar_select %p202, %s21, 3
        %s204 = smul.addr %s203, 8
        %s205 = scalar_lea.vmem %s2, %s204
        %p206 = pneg %p99
        %p207 = pneg %p96
        %p208 = pneg %p125
        %p209 = pneg %p122
        %p210 = scmp.lt.s32.totalorder %s21, 3
        %s211 = scalar_select %p210, %s21, 3
        %s212 = smul.addr %s211, 8
        %s213 = scalar_lea.vmem %s3, %s212
        %s214 = smul.u32 16, %s22
        %p215 = scmp.lt.s32.totalorder %s21, 3
        %s216 = scalar_select %p215, %s21, 3
        %s217 = smul.addr %s216, 8
        %s218 = scalar_lea.vmem %s2, %s217
        %p219 = scmp.lt.s32.totalorder %s21, 3
        %s220 = scalar_select %p219, %s21, 3
        %s221 = smul.addr %s220, 8
        %s222 = scalar_lea.vmem %s3, %s221
        %p224 = scmp.eq.s32.totalorder %s22, 0
        // Predicated region
        $region37: #{fidelity_forward.2} parent=31 // pred_check
          %p225 = pneg %p224
        $region38: #{fidelity_forward.2} parent=31 // pred_check_branch
          %227 = sbr.rel (%p225) target = $region40
        $region39: #{fidelity_forward.2} parent=31 // pred_region
          %v228 = vld [vmem:[%s218] sm:$0xff]
          %229 = vst [vmem:[%s222] sm:$0xff] %v228
        $region40: #{fidelity_forward.2} parent=31 // pred_fallthru
          _
        %v230 = vld [vmem:[%s222] sm:$0xff]
        %s231 = smul.addr %s22, 4
        %s232 = scalar_lea.vmem %s0, %s231
        %v233 = vld [vmem:[%s232] sm:$0xf]
        %v234 = vld [vmem:[%s188] sm:$0xf]
        %v235 = vld [vmem:[%s188 + $0x4] sm:$0xf]
        %v236 = vld [vmem:[%s188 + $0x8] sm:$0xf]
        %v237 = vld [vmem:[%s188 + $0xc] sm:$0xf]
        %v238 = vld [vmem:[%s188 + $0x10] sm:$0xf]
        %v239 = vld [vmem:[%s188 + $0x14] sm:$0xf]
        %v240 = vld [vmem:[%s188 + $0x18] sm:$0xf]
        %v241 = vld [vmem:[%s188 + $0x1c] sm:$0xf]
        %v242 = vld [vmem:[%s188 + $0x20] sm:$0xf]
        %v243 = vld [vmem:[%s188 + $0x24] sm:$0xf]
        %v244 = vld [vmem:[%s188 + $0x28] sm:$0xf]
        %v245 = vld [vmem:[%s188 + $0x2c] sm:$0xf]
        %v246 = vld [vmem:[%s188 + $0x30] sm:$0xf]
        %v247 = vld [vmem:[%s188 + $0x34] sm:$0xf]
        %v248 = vld [vmem:[%s188 + $0x38] sm:$0xf]
        %v249 = vld [vmem:[%s188 + $0x3c] sm:$0xf]
        %v266 = vunpack.c.l.b16 %v234
        %v267 = vunpack.c.l.b16 %v235
        %v268 = vunpack.c.l.b16 %v236
        %v269 = vunpack.c.l.b16 %v237
        %v270 = vunpack.c.l.b16 %v238
        %v271 = vunpack.c.l.b16 %v239
        %v272 = vunpack.c.l.b16 %v240
        %v273 = vunpack.c.l.b16 %v241
        %v274 = vunpack.c.l.b16 %v242
        %v275 = vunpack.c.l.b16 %v243
        %v276 = vunpack.c.l.b16 %v244
        %v277 = vunpack.c.l.b16 %v245
        %v278 = vunpack.c.l.b16 %v246
        %v279 = vunpack.c.l.b16 %v247
        %v280 = vunpack.c.l.b16 %v248
        %v281 = vunpack.c.l.b16 %v249
        %v282 = vpack.c.b16 %v267, %v266
        %v283 = vpack.c.b16 %v269, %v268
        %v284 = vpack.c.b16 %v271, %v270
        %v285 = vpack.c.b16 %v273, %v272
        %v286 = vpack.c.b16 %v275, %v274
        %v287 = vpack.c.b16 %v277, %v276
        %v288 = vpack.c.b16 %v279, %v278
        %v289 = vpack.c.b16 %v281, %v280
        %298 = vmatprep.subr.bf16.mxu0 0
        %299 = vmatpush1.bf16.msra.mxu0 %v289
        %300 = vmatprep.subr.bf16.mxu0 0
        %301 = vmatpush1.bf16.msra.mxu0 %v288
        %302 = vmatprep.subr.bf16.mxu0 0
        %303 = vmatpush1.bf16.msra.mxu0 %v287
        %304 = vmatprep.subr.bf16.mxu0 0
        %305 = vmatpush1.bf16.msra.mxu0 %v286
        %306 = vmatprep.subr.bf16.mxu0 0
        %307 = vmatpush1.bf16.msra.mxu0 %v285
        %308 = vmatprep.subr.bf16.mxu0 0
        %309 = vmatpush1.bf16.msra.mxu0 %v284
        %310 = vmatprep.subr.bf16.mxu0 0
        %311 = vmatpush1.bf16.msra.mxu0 %v283
        %312 = vmatprep.subr.bf16.mxu0 0
        %313 = vmatpush1.bf16.msra.mxu0 %v282
        %314 = vmatprep.subr.bf16.mxu0 0
        %315 = vmatpush2.bf16.msra.mxu0 0
        %316 = vmatprep.subr.bf16.mxu0 0
        %317 = vmatpush2.bf16.msra.mxu0 0
        %318 = vmatprep.subr.bf16.mxu0 0
        %319 = vmatpush2.bf16.msra.mxu0 0
        %320 = vmatprep.subr.bf16.mxu0 0
        %321 = vmatpush2.bf16.msra.mxu0 0
        %322 = vmatprep.subr.bf16.mxu0 0
        %323 = vmatpush2.bf16.msra.mxu0 0
        %324 = vmatprep.subr.bf16.mxu0 0
        %325 = vmatpush2.bf16.msra.mxu0 0
        %326 = vmatprep.subr.bf16.mxu0 0
        %327 = vmatpush2.bf16.msra.mxu0 0
        %328 = vmatprep.subr.bf16.mxu0 0
        %329 = vmatpush2.bf16.msra.mxu0 0
        %330 = vmatprep.mubr.bf16.mxu0 0
        %331 = vmatmul.mubr.bf16.gmra.mxu0 %v233
        %v332 = vpop.f32.mrf.mxu0
        %v333 = vadd.f32 0.0, %v332
        %v334 = vpop.f32.mrf.mxu0
        %v335 = vpop.f32.mrf.mxu0
        %v336 = vpop.f32.mrf.mxu0
        %337 = vdwg.mxu0
        %v338 = vsub.f32 %v230, %v333
        %339 = vst [vmem:[%s222] sm:$0xff] %v338
        %p340 = scmp.lt.s32.totalorder %s21, 3
        %s341 = scalar_select %p340, %s21, 3
        %s342 = smul.addr %s341, 8
        %s343 = scalar_lea.vmem %s3, %s342
        // Predicated region
        $region41: #{fidelity_forward.2} parent=31 // pred_check
          %p344 = pneg %p122
        $region42: #{fidelity_forward.2} parent=31 // pred_check_branch
          %346 = sbr.rel (%p344) target = $region44
        $region43: #{fidelity_forward.2} parent=31 // pred_region
          _
        $region44: #{fidelity_forward.2} parent=31 // pred_fallthru
          _
      $region32: #{fidelity_forward.2} parent=5 // pred_fallthru
        _
      %p347 = scmp.le.s32.totalorder 2, %s12
      // Predicated region
      $region45: #{fidelity_forward.2} parent=5 // pred_check
        %p348 = pneg %p347
      $region46: #{fidelity_forward.2} parent=5 // pred_check_branch
        %350 = sbr.rel (%p348) target = $region48
      $region47: #{fidelity_forward.2} parent=5 // pred_region
        %s351 = ssub.s32 %s12, 2
        // Predicated region
        $region49: #{fidelity_forward.2} parent=47 // pred_check
          %p352 = pneg %p128
        $region50: #{fidelity_forward.2} parent=47 // pred_check_branch
          %354 = sbr.rel (%p352) target = $region52
        $region51: #{fidelity_forward.2} parent=47 // pred_region
          %p355 = scmp.lt.s32.totalorder %s23, 3
          %s356 = scalar_select %p355, %s23, 3
          %s357 = smul.addr %s356, 8
          %s358 = scalar_lea.vmem %s3, %s357
        $region52: #{fidelity_forward.2} parent=47 // pred_fallthru
          _
      $region48: #{fidelity_forward.2} parent=5 // pred_fallthru
        _
    $region6: #{fidelity_forward.2} parent=1 // loop_footer
      %s16 = sadd.s32 1, %s12
    $region7: #{fidelity_forward.2} parent=1 // loop_footer_branch
      %11 = sbr.rel target = $region3
    $region8: #{fidelity_forward.2} parent=1 // loop_exit
      _
    %359 = vsyncpa [#allocation3], 1
    %s360 = scalar_lea.sflag [#allocation3], 1
    %361 = vsyncpa %s360, 1

// kernel: fidelity_forward.3
$region0: #{fidelity_forward.3}
  #allocation0 [shape = 'u32[]', space=smem, size = 0x4, offset = 0x4, fixed_abs, tag = 'smem constant byte address 0x4 - core index']
  #allocation1 [shape = 'u32[144,128]{1,0:T(1,128)}', space=vmem, size = 0x12000, scoped, tag = 'internal scratch']
  %s0 = inlined_call_operand.vmem [shape: f32[4,8,128], index: 0, kind: input, shape index: {}]
  %s1 = inlined_call_operand.vmem [shape: bf16[512,256], index: 1, kind: input, shape index: {}]
  %s2 = inlined_call_operand.vmem [shape: f32[8,256], index: 2, kind: output, shape index: {}]
  %s3 = sld [smem:[#allocation0]]
  $region86: #{fidelity_forward.3} parent=0
    _
  %s5 = ssub.s32 1, %s3
  %s6 = scalar_select 0, %s5, %s3
  $region1: #{fidelity_forward.3} parent=0
    #allocation2 [shape = 'u8[65536]{0}', space=vmem, size = 0x10000, scoped, tag = 'input window, operand 1']
    loop: start=0, step=1, limit=10
    $region2: #{fidelity_forward.3} parent=1 // loop_pre_header
      _
    $region3: #{fidelity_forward.3} parent=1 // loop_header
      %s8 = sphi 0, %s12
      %p9 = scmp.ge.s32.totalorder %s8, 10
      %s15 = sphi 0, %s27
      %s16 = sphi 0, %s23
      %s17 = sphi 0, %s15
      %s18 = sphi 0, %s16
      %s19 = sphi 0, %s17
      %s20 = sphi 0, %s18
      %s28 = sphi 0, %s28
      %s30 = sphi 0, %s28
      %s31 = sphi 0, %s30
      %s45 = sphi 0, %s31
      %s53 = sphi 0, %s55
      %s56 = sphi 0, %s53
      %s57 = sphi 0, %s56
      %s73 = sphi 0, %s57
      %s79 = sphi 0, %s81
      %s82 = sphi 0, %s79
      %s83 = sphi 0, %s82
      %s99 = sphi 0, %s83
    $region4: #{fidelity_forward.3} parent=1 // loop_header_branch
      %11 = sbr.rel (%p9) target = $region8
    $region5: #{fidelity_forward.3} parent=1 // loop_body
      %s13 = ssub.s32 %s8, 1
      %s14 = ssub.s32 %s8, 2
      %s21 = sadd.s32 1, %s16
      %p22 = scmp.ge.s32.totalorder %s21, 4
      %s23 = scalar_select %p22, 0, %s21
      %s24 = sadd.s32 1, %s15
      %s25 = scalar_select %p22, %s24, %s15
      %p26 = scmp.ge.s32.totalorder %s25, 2
      %s27 = scalar_select %p26, 0, %s25
      %s29 = sadd.s32 %s28, 1
      %p32 = scmp.eq.s32.totalorder %s8, 7
      %p33 = scmp.ne.s32.totalorder %s28, %s30
      %p34 = scmp.eq.s32.totalorder %s8, 0
      %p35 = por %p33, %p34
      %p36 = scmp.ne.s32.totalorder %s28, %s30
      %p37 = scmp.eq.s32.totalorder %s13, 7
      %p38 = por %p36, %p37
      %p39 = scmp.ne.s32.totalorder %s30, %s31
      %p40 = scmp.eq.s32.totalorder %s13, 0
      %p41 = por %p39, %p40
      %p42 = scmp.ne.s32.totalorder %s30, %s31
      %p43 = scmp.eq.s32.totalorder %s14, 7
      %p44 = por %p42, %p43
      %p46 = scmp.ne.s32.totalorder %s31, %s45
      %p47 = scmp.eq.s32.totalorder %s14, 0
      %p48 = por %p46, %p47
      %s49 = ssub.s32 %s16, %s23
      %s50 = ssub.s32 %s15, %s27
      %s51 = sor.u32 %s49, %s50
      %p52 = scmp.eq.s32.totalorder %s51, 0
      %s54 = sadd.s32 %s53, 1
      %s55 = scalar_select %p52, %s53, %s54
      %p58 = pneg %p52
      %p59 = scmp.eq.s32.totalorder %s8, 7
      %p60 = por %p58, %p59
      %p61 = scmp.ne.s32.totalorder %s53, %s56
      %p62 = scmp.eq.s32.totalorder %s8, 0
      %p63 = por %p61, %p62
      %p64 = scmp.ne.s32.totalorder %s53, %s56
      %p65 = scmp.eq.s32.totalorder %s13, 7
      %p66 = por %p64, %p65
      %p67 = scmp.ne.s32.totalorder %s56, %s57
      %p68 = scmp.eq.s32.totalorder %s13, 0
      %p69 = por %p67, %p68
      %p70 = scmp.ne.s32.totalorder %s56, %s57
      %p71 = scmp.eq.s32.totalorder %s14, 7
      %p72 = por %p70, %p71
      %p74 = scmp.ne.s32.totalorder %s57, %s73
      %p75 = scmp.eq.s32.totalorder %s14, 0
      %p76 = por %p74, %p75
      %s77 = ssub.s32 %s15, %s27
      %p78 = scmp.eq.s32.totalorder %s77, 0
      %s80 = sadd.s32 %s79, 1
      %s81 = scalar_select %p78, %s79, %s80
      %p84 = pneg %p78
      %p85 = scmp.eq.s32.totalorder %s8, 7
      %p86 = por %p84, %p85
      %p87 = scmp.ne.s32.totalorder %s79, %s82
      %p88 = scmp.eq.s32.totalorder %s8, 0
      %p89 = por %p87, %p88
      %p90 = scmp.ne.s32.totalorder %s79, %s82
      %p91 = scmp.eq.s32.totalorder %s13, 7
      %p92 = por %p90, %p91
      %p93 = scmp.ne.s32.totalorder %s82, %s83
      %p94 = scmp.eq.s32.totalorder %s13, 0
      %p95 = por %p93, %p94
      %p96 = scmp.ne.s32.totalorder %s82, %s83
      %p97 = scmp.eq.s32.totalorder %s14, 7
      %p98 = por %p96, %p97
      %p100 = scmp.ne.s32.totalorder %s83, %s99
      %p101 = scmp.eq.s32.totalorder %s14, 0
      %p102 = por %p100, %p101
      %p103 = scmp.le.s32.totalorder 1, %s8
      %p104 = scmp.lt.s32.totalorder %s8, 9
      %p105 = pnand %p103, %p104
      %p106 = pneg %p105
      // Predicated region
      $region9: #{fidelity_forward.3} parent=5 // pred_check
        _
      $region10: #{fidelity_forward.3} parent=5 // pred_check_branch
        %108 = sbr.rel (%p105) target = $region12
      $region11: #{fidelity_forward.3} parent=5 // pred_region
        %s109 = ssub.s32 %s8, 1
        // Predicated region
        $region13: #{fidelity_forward.3} parent=11 // pred_check
          %p110 = pneg %p41
        $region14: #{fidelity_forward.3} parent=11 // pred_check_branch
          %112 = sbr.rel (%p110) target = $region16
        $region15: #{fidelity_forward.3} parent=11 // pred_region
          _
        $region16: #{fidelity_forward.3} parent=11 // pred_fallthru
          _
      $region12: #{fidelity_forward.3} parent=5 // pred_fallthru
        _
      %p113 = scmp.lt.s32.totalorder %s8, 8
      // Predicated region
      $region17: #{fidelity_forward.3} parent=5 // pred_check
        %p114 = pneg %p113
      $region18: #{fidelity_forward.3} parent=5 // pred_check_branch
        %116 = sbr.rel (%p114) target = $region20
      $region19: #{fidelity_forward.3} parent=5 // pred_region
        // Predicated region
        $region21: #{fidelity_forward.3} parent=19 // pred_check
          %p117 = pneg %p63
        $region22: #{fidelity_forward.3} parent=19 // pred_check_branch
          %119 = sbr.rel (%p117) target = $region24
        $region23: #{fidelity_forward.3} parent=19 // pred_region
          %s120 = sand.u32 %s53, 1
          %s121 = sand.u32 %s53, 1
          %s122 = smul.addr %s121, 64
          %s123 = scalar_lea.vmem [#allocation2], %s122
          %s124 = smul.u32 16, %s16
          %s125 = smul.addr %s124, 2
          %s126 = sadd.s32 %s15, %s125
          %s127 = smul.addr %s126, 4
          %s128 = scalar_lea.vmem %s1, %s127
          // Predicated region
          $region25: #{fidelity_forward.3} parent=23 // pred_check
            _
          $region26: #{fidelity_forward.3} parent=23 // pred_check_branch
            %130 = sbr.rel (0) target = $region28
          $region27: #{fidelity_forward.3} parent=23 // pred_region
            // Predicated region
            $region29: #{fidelity_forward.3} parent=27 // pred_check
              _
            $region30: #{fidelity_forward.3} parent=27 // pred_check_branch
              %132 = sbr.rel target = $region32
            $region31: #{fidelity_forward.3} parent=27 // pred_region
              // Predicated region
              $region44: #{fidelity_forward.3} parent=31 // pred_check
                _
              $region45: #{fidelity_forward.3} parent=31 // pred_check_branch
                %178 = sbr.rel (0) target = $region47
              $region46: #{fidelity_forward.3} parent=31 // pred_region
                loop: start=0, step=1, limit=1
                $region48: #{fidelity_forward.3} parent=46 // loop_pre_header
                  _
                $region49: #{fidelity_forward.3} parent=46 // loop_header
                  %s180 = sphi 0, %s184
                  %p181 = scmp.ge.s32.totalorder %s180, 1
                  %s185 = sphi %s128, %s128
                  %s186 = sphi %s123, %s123
                $region50: #{fidelity_forward.3} parent=46 // loop_header_branch
                  %183 = sbr.rel (%p181) target = $region54
                $region51: #{fidelity_forward.3} parent=46 // loop_body
                  _
                $region52: #{fidelity_forward.3} parent=46 // loop_footer
                  %s184 = sadd.s32 1, %s180
                $region53: #{fidelity_forward.3} parent=46 // loop_footer_branch
                  %179 = sbr.rel target = $region49
                $region54: #{fidelity_forward.3} parent=46 // loop_exit
                  _
                %s188 = ssub.s32 16, 1
                loop: start=0, step=1, limit=1
                $region55: #{fidelity_forward.3} parent=46 // loop_pre_header
                  _
                $region56: #{fidelity_forward.3} parent=46 // loop_header
                  %s190 = sphi 0, %s194
                  %p191 = scmp.ge.s32.totalorder %s190, 1
                  %s195 = sphi %s128, %s128
                  %s196 = sphi %s123, %s123
                $region57: #{fidelity_forward.3} parent=46 // loop_header_branch
                  %193 = sbr.rel (%p191) target = $region61
                $region58: #{fidelity_forward.3} parent=46 // loop_body
                  %v197 = vld [vmem:[%s195] sm:%s188]
                  %198 = vst [vmem:[%s196] sm:%s188] %v197
                  %v199 = vld [vmem:[%s195 + $0x8] sm:%s188]
                  %200 = vst [vmem:[%s196 + $0x4] sm:%s188] %v199
                  %v201 = vld [vmem:[%s195 + $0x10] sm:%s188]
                  %202 = vst [vmem:[%s196 + $0x8] sm:%s188] %v201
                  %v203 = vld [vmem:[%s195 + $0x18] sm:%s188]
                  %204 = vst [vmem:[%s196 + $0xc] sm:%s188] %v203
                  %v205 = vld [vmem:[%s195 + $0x20] sm:%s188]
                  %206 = vst [vmem:[%s196 + $0x10] sm:%s188] %v205
                  %v207 = vld [vmem:[%s195 + $0x28] sm:%s188]
                  %208 = vst [vmem:[%s196 + $0x14] sm:%s188] %v207
                  %v209 = vld [vmem:[%s195 + $0x30] sm:%s188]
                  %210 = vst [vmem:[%s196 + $0x18] sm:%s188] %v209
                  %v211 = vld [vmem:[%s195 + $0x38] sm:%s188]
                  %212 = vst [vmem:[%s196 + $0x1c] sm:%s188] %v211
                  %v213 = vld [vmem:[%s195 + $0x40] sm:%s188]
                  %214 = vst [vmem:[%s196 + $0x20] sm:%s188] %v213
                  %v215 = vld [vmem:[%s195 + $0x48] sm:%s188]
                  %216 = vst [vmem:[%s196 + $0x24] sm:%s188] %v215
                  %v217 = vld [vmem:[%s195 + $0x50] sm:%s188]
                  %218 = vst [vmem:[%s196 + $0x28] sm:%s188] %v217
                  %v219 = vld [vmem:[%s195 + $0x58] sm:%s188]
                  %220 = vst [vmem:[%s196 + $0x2c] sm:%s188] %v219
                  %v221 = vld [vmem:[%s195 + $0x60] sm:%s188]
                  %222 = vst [vmem:[%s196 + $0x30] sm:%s188] %v221
                  %v223 = vld [vmem:[%s195 + $0x68] sm:%s188]
                  %224 = vst [vmem:[%s196 + $0x34] sm:%s188] %v223
                  %v225 = vld [vmem:[%s195 + $0x70] sm:%s188]
                  %226 = vst [vmem:[%s196 + $0x38] sm:%s188] %v225
                  %v227 = vld [vmem:[%s195 + $0x78] sm:%s188]
                  %228 = vst [vmem:[%s196 + $0x3c] sm:%s188] %v227
                $region59: #{fidelity_forward.3} parent=46 // loop_footer
                  %s194 = sadd.s32 1, %s190
                $region60: #{fidelity_forward.3} parent=46 // loop_footer_branch
                  %189 = sbr.rel target = $region56
                $region61: #{fidelity_forward.3} parent=46 // loop_exit
                  _
              $region47: #{fidelity_forward.3} parent=31 // pred_fallthru
                _
            $region32: #{fidelity_forward.3} parent=27 // pred_fallthru
              _
            // Predicated region
            $region33: #{fidelity_forward.3} parent=27 // pred_check
              _
            $region34: #{fidelity_forward.3} parent=27 // pred_check_branch
              %134 = sbr.rel (0) target = $region36
            $region35: #{fidelity_forward.3} parent=27 // pred_region
              %s136 = ssub.s32 16, 1
              loop: start=0, step=1, limit=1
              $region37: #{fidelity_forward.3} parent=35 // loop_pre_header
                _
              $region38: #{fidelity_forward.3} parent=35 // loop_header
                %s138 = sphi 0, %s142
                %p139 = scmp.ge.s32.totalorder %s138, 1
                %s143 = sphi %s128, %s128
                %s144 = sphi %s123, %s123
              $region39: #{fidelity_forward.3} parent=35 // loop_header_branch
                %141 = sbr.rel (%p139) target = $region43
              $region40: #{fidelity_forward.3} parent=35 // loop_body
                %v145 = vld [vmem:[%s143] sm:%s136]
                %146 = vst [vmem:[%s144] sm:%s136] %v145
                %v147 = vld [vmem:[%s143 + $0x8] sm:%s136]
                %148 = vst [vmem:[%s144 + $0x4] sm:%s136] %v147
                %v149 = vld [vmem:[%s143 + $0x10] sm:%s136]
                %150 = vst [vmem:[%s144 + $0x8] sm:%s136] %v149
                %v151 = vld [vmem:[%s143 + $0x18] sm:%s136]
                %152 = vst [vmem:[%s144 + $0xc] sm:%s136] %v151
                %v153 = vld [vmem:[%s143 + $0x20] sm:%s136]
                %154 = vst [vmem:[%s144 + $0x10] sm:%s136] %v153
                %v155 = vld [vmem:[%s143 + $0x28] sm:%s136]
                %156 = vst [vmem:[%s144 + $0x14] sm:%s136] %v155
                %v157 = vld [vmem:[%s143 + $0x30] sm:%s136]
                %158 = vst [vmem:[%s144 + $0x18] sm:%s136] %v157
                %v159 = vld [vmem:[%s143 + $0x38] sm:%s136]
                %160 = vst [vmem:[%s144 + $0x1c] sm:%s136] %v159
                %v161 = vld [vmem:[%s143 + $0x40] sm:%s136]
                %162 = vst [vmem:[%s144 + $0x20] sm:%s136] %v161
                %v163 = vld [vmem:[%s143 + $0x48] sm:%s136]
                %164 = vst [vmem:[%s144 + $0x24] sm:%s136] %v163
                %v165 = vld [vmem:[%s143 + $0x50] sm:%s136]
                %166 = vst [vmem:[%s144 + $0x28] sm:%s136] %v165
                %v167 = vld [vmem:[%s143 + $0x58] sm:%s136]
                %168 = vst [vmem:[%s144 + $0x2c] sm:%s136] %v167
                %v169 = vld [vmem:[%s143 + $0x60] sm:%s136]
                %170 = vst [vmem:[%s144 + $0x30] sm:%s136] %v169
                %v171 = vld [vmem:[%s143 + $0x68] sm:%s136]
                %172 = vst [vmem:[%s144 + $0x34] sm:%s136] %v171
                %v173 = vld [vmem:[%s143 + $0x70] sm:%s136]
                %174 = vst [vmem:[%s144 + $0x38] sm:%s136] %v173
                %v175 = vld [vmem:[%s143 + $0x78] sm:%s136]
                %176 = vst [vmem:[%s144 + $0x3c] sm:%s136] %v175
              $region41: #{fidelity_forward.3} parent=35 // loop_footer
                %s142 = sadd.s32 1, %s138
              $region42: #{fidelity_forward.3} parent=35 // loop_footer_branch
                %137 = sbr.rel target = $region38
              $region43: #{fidelity_forward.3} parent=35 // loop_exit
                _
            $region36: #{fidelity_forward.3} parent=27 // pred_fallthru
              _
          $region28: #{fidelity_forward.3} parent=23 // pred_fallthru
            _
          %229 = vnop
        $region24: #{fidelity_forward.3} parent=19 // pred_fallthru
          _
      $region20: #{fidelity_forward.3} parent=5 // pred_fallthru
        _
      %p230 = scmp.le.s32.totalorder 1, %s8
      %p231 = scmp.lt.s32.totalorder %s8, 9
      %p232 = pnand %p230, %p231
      %p233 = pneg %p232
      // Predicated region
      $region62: #{fidelity_forward.3} parent=5 // pred_check
        _
      $region63: #{fidelity_forward.3} parent=5 // pred_check_branch
        %235 = sbr.rel (%p232) target = $region65
      $region64: #{fidelity_forward.3} parent=5 // pred_region
        %s236 = ssub.s32 %s8, 1
        %s237 = sand.u32 %s56, 1
        %s238 = sand.u32 %s56, 1
        %s239 = smul.addr %s238, 64
        %s240 = scalar_lea.vmem [#allocation2], %s239
        // Predicated region
        $region66: #{fidelity_forward.3} parent=64 // pred_check
          %p241 = pneg %p69
        $region67: #{fidelity_forward.3} parent=64 // pred_check_branch
          %243 = sbr.rel (%p241) target = $region69
        $region68: #{fidelity_forward.3} parent=64 // pred_region
          _
        $region69: #{fidelity_forward.3} parent=64 // pred_fallthru
          _
        %p244 = pneg %p41
        %p245 = pneg %p38
        %s246 = sand.u32 %s56, 1
        %s247 = sand.u32 %s56, 1
        %s248 = smul.addr %s247, 64
        %s249 = scalar_lea.vmem [#allocation2], %s248
        %p250 = pneg %p69
        %p251 = pneg %p66
        %p252 = pneg %p95
        %p253 = pneg %p92
        %p254 = scmp.lt.s32.totalorder %s17, 1
        %s255 = scalar_select %p254, %s17, 1
        %s256 = smul.addr %s255, 8
        %s257 = scalar_lea.vmem %s2, %s256
        %s258 = smul.u32 16, %s18
        %p259 = scmp.lt.s32.totalorder %s17, 1
        %s260 = scalar_select %p259, %s17, 1
        %s261 = smul.addr %s260, 8
        %s262 = scalar_lea.vmem %s2, %s261
        %p264 = scmp.eq.s32.totalorder %s18, 0
        // Predicated region
        $region70: #{fidelity_forward.3} parent=64 // pred_check
          %p265 = pneg %p264
        $region71: #{fidelity_forward.3} parent=64 // pred_check_branch
          %267 = sbr.rel (%p265) target = $region73
        $region72: #{fidelity_forward.3} parent=64 // pred_region
          %268 = vst [vmem:[%s262] sm:$0xff] 0.0
        $region73: #{fidelity_forward.3} parent=64 // pred_fallthru
          _
        %v269 = vld [vmem:[%s262] sm:$0xff]
        %s270 = smul.u32 %s18, 8
        %s271 = scalar_lea.vmem %s0, %s270
        %v272 = vld [vmem:[%s271] sm:$0xff]
        %v273 = vpack.c.bf16 %v272, %v272
        %v274 = vld [vmem:[%s240] sm:$0xf]
        %v275 = vld [vmem:[%s240 + $0x4] sm:$0xf]
        %v276 = vld [vmem:[%s240 + $0x8] sm:$0xf]
        %v277 = vld [vmem:[%s240 + $0xc] sm:$0xf]
        %v278 = vld [vmem:[%s240 + $0x10] sm:$0xf]
        %v279 = vld [vmem:[%s240 + $0x14] sm:$0xf]
        %v280 = vld [vmem:[%s240 + $0x18] sm:$0xf]
        %v281 = vld [vmem:[%s240 + $0x1c] sm:$0xf]
        %v282 = vld [vmem:[%s240 + $0x20] sm:$0xf]
        %v283 = vld [vmem:[%s240 + $0x24] sm:$0xf]
        %v284 = vld [vmem:[%s240 + $0x28] sm:$0xf]
        %v285 = vld [vmem:[%s240 + $0x2c] sm:$0xf]
        %v286 = vld [vmem:[%s240 + $0x30] sm:$0xf]
        %v287 = vld [vmem:[%s240 + $0x34] sm:$0xf]
        %v288 = vld [vmem:[%s240 + $0x38] sm:$0xf]
        %v289 = vld [vmem:[%s240 + $0x3c] sm:$0xf]
        %v306 = vunpack.c.l.b16 %v274
        %v307 = vunpack.c.l.b16 %v275
        %v308 = vunpack.c.l.b16 %v276
        %v309 = vunpack.c.l.b16 %v277
        %v310 = vunpack.c.l.b16 %v278
        %v311 = vunpack.c.l.b16 %v279
        %v312 = vunpack.c.l.b16 %v280
        %v313 = vunpack.c.l.b16 %v281
        %v314 = vunpack.c.l.b16 %v282
        %v315 = vunpack.c.l.b16 %v283
        %v316 = vunpack.c.l.b16 %v284
        %v317 = vunpack.c.l.b16 %v285
        %v318 = vunpack.c.l.b16 %v286
        %v319 = vunpack.c.l.b16 %v287
        %v320 = vunpack.c.l.b16 %v288
        %v321 = vunpack.c.l.b16 %v289
        %v322 = vpack.c.b16 %v307, %v306
        %v323 = vpack.c.b16 %v309, %v308
        %v324 = vpack.c.b16 %v311, %v310
        %v325 = vpack.c.b16 %v313, %v312
        %v326 = vpack.c.b16 %v315, %v314
        %v327 = vpack.c.b16 %v317, %v316
        %v328 = vpack.c.b16 %v319, %v318
        %v329 = vpack.c.b16 %v321, %v320
        %338 = vmatprep.subr.bf16.mxu0 0
        %339 = vmatpush1.bf16.msra.mxu0 %v329
        %340 = vmatprep.subr.bf16.mxu0 0
        %341 = vmatpush1.bf16.msra.mxu0 %v328
        %342 = vmatprep.subr.bf16.mxu0 0
        %343 = vmatpush1.bf16.msra.mxu0 %v327
        %344 = vmatprep.subr.bf16.mxu0 0
        %345 = vmatpush1.bf16.msra.mxu0 %v326
        %346 = vmatprep.subr.bf16.mxu0 0
        %347 = vmatpush1.bf16.msra.mxu0 %v325
        %348 = vmatprep.subr.bf16.mxu0 0
        %349 = vmatpush1.bf16.msra.mxu0 %v324
        %350 = vmatprep.subr.bf16.mxu0 0
        %351 = vmatpush1.bf16.msra.mxu0 %v323
        %352 = vmatprep.subr.bf16.mxu0 0
        %353 = vmatpush1.bf16.msra.mxu0 %v322
        %354 = vmatprep.subr.bf16.mxu0 0
        %355 = vmatpush2.bf16.msra.mxu0 0
        %356 = vmatprep.subr.bf16.mxu0 0
        %357 = vmatpush2.bf16.msra.mxu0 0
        %358 = vmatprep.subr.bf16.mxu0 0
        %359 = vmatpush2.bf16.msra.mxu0 0
        %360 = vmatprep.subr.bf16.mxu0 0
        %361 = vmatpush2.bf16.msra.mxu0 0
        %362 = vmatprep.subr.bf16.mxu0 0
        %363 = vmatpush2.bf16.msra.mxu0 0
        %364 = vmatprep.subr.bf16.mxu0 0
        %365 = vmatpush2.bf16.msra.mxu0 0
        %366 = vmatprep.subr.bf16.mxu0 0
        %367 = vmatpush2.bf16.msra.mxu0 0
        %368 = vmatprep.subr.bf16.mxu0 0
        %369 = vmatpush2.bf16.msra.mxu0 0
        %370 = vmatprep.mubr.bf16.mxu0 0
        %371 = vmatmul.mubr.bf16.gmra.mxu0 %v273
        %v372 = vpop.f32.mrf.mxu0
        %v373 = vadd.f32 0.0, %v372
        %v374 = vpop.f32.mrf.mxu0
        %v375 = vpop.f32.mrf.mxu0
        %v376 = vpop.f32.mrf.mxu0
        %377 = vdwg.mxu0
        %v378 = vadd.f32 %v269, %v373
        %379 = vst [vmem:[%s262] sm:$0xff] %v378
        %p380 = scmp.lt.s32.totalorder %s17, 1
        %s381 = scalar_select %p380, %s17, 1
        %s382 = smul.addr %s381, 8
        %s383 = scalar_lea.vmem %s2, %s382
        // Predicated region
        $region74: #{fidelity_forward.3} parent=64 // pred_check
          %p384 = pneg %p92
        $region75: #{fidelity_forward.3} parent=64 // pred_check_branch
          %386 = sbr.rel (%p384) target = $region77
        $region76: #{fidelity_forward.3} parent=64 // pred_region
          _
        $region77: #{fidelity_forward.3} parent=64 // pred_fallthru
          _
      $region65: #{fidelity_forward.3} parent=5 // pred_fallthru
        _
      %p387 = scmp.le.s32.totalorder 2, %s8
      // Predicated region
      $region78: #{fidelity_forward.3} parent=5 // pred_check
        %p388 = pneg %p387
      $region79: #{fidelity_forward.3} parent=5 // pred_check_branch
        %390 = sbr.rel (%p388) target = $region81
      $region80: #{fidelity_forward.3} parent=5 // pred_region
        %s391 = ssub.s32 %s8, 2
        // Predicated region
        $region82: #{fidelity_forward.3} parent=80 // pred_check
          %p392 = pneg %p98
        $region83: #{fidelity_forward.3} parent=80 // pred_check_branch
          %394 = sbr.rel (%p392) target = $region85
        $region84: #{fidelity_forward.3} parent=80 // pred_region
          %p395 = scmp.lt.s32.totalorder %s19, 1
          %s396 = scalar_select %p395, %s19, 1
          %s397 = smul.addr %s396, 8
          %s398 = scalar_lea.vmem %s2, %s397
        $region85: #{fidelity_forward.3} parent=80 // pred_fallthru
          _
      $region81: #{fidelity_forward.3} parent=5 // pred_fallthru
        _
    $region6: #{fidelity_forward.3} parent=1 // loop_footer
      %s12 = sadd.s32 1, %s8
    $region7: #{fidelity_forward.3} parent=1 // loop_footer_branch
      %7 = sbr.rel target = $region3
    $region8: #{fidelity_forward.3} parent=1 // loop_exit
      _

</llo_original>
